<compile_context>
chip_gen: v7x
topology: tpu7x:2x2x1
jax: 0.10.0
libtpu: 0.0.40
codegen_flags: <defaults>
</compile_context>

<pallas_src>
import jax
import jax.numpy as jnp
from jax.experimental import pallas as pl
from jax.experimental.pallas import tpu as pltpu


_LANES = 128
_SUBLANES = 8
# ~4 MiB per block: with 1 input + 1 output, each double-buffered, peak live
# VMEM is ~4x a block (~16 MiB) -> fits v5e/v6e (128 MiB) and v7x (64 MiB).
_TARGET_BLOCK_BYTES = 4 * 1024 * 1024


def _identity_copy_kernel(x_ref, o_ref):
    # Pure pass-through on the current VMEM tile.
    o_ref[...] = x_ref[...]


def _collapse_to_2d(x: jax.Array) -> jax.Array:
    """Collapse `x` into a lane-dense 2D view (R, C) with only free reshapes.

    C is chosen as the largest contiguous trailing-dim product that is a
    multiple of 128 lanes and at most ~4 MiB (wide, unmasked vector stores).
    If no trailing suffix is 128-aligned, the array is kept as
    (leading, trailing) and copied as a single full block, which is always
    layout-legal (block_shape == full array dims).
    """
    shape = x.shape
    itemsize = x.dtype.itemsize

    best = None
    prod = 1
    for d in reversed(shape):
        prod *= d
        if prod % _LANES == 0 and prod * itemsize <= _TARGET_BLOCK_BYTES:
            best = prod

    if best is not None:
        return x.reshape(-1, best)

    # Ragged fallback: keep the native trailing dim (small tensors only here).
    if x.ndim >= 2:
        return x.reshape(-1, shape[-1])
    return x.reshape(1, -1)


def _pallas_copy(x: jax.Array) -> jax.Array:
    """Identity copy of one tensor through a tiled Pallas kernel."""
    orig_shape = x.shape
    x2 = _collapse_to_2d(x)
    R, C = x2.shape
    itemsize = x2.dtype.itemsize

    if C % _LANES == 0 and R > 1:
        # Multi-MiB row blocks, rows a multiple of 8 (sublane constraint).
        rows = (_TARGET_BLOCK_BYTES // (C * itemsize)) // _SUBLANES * _SUBLANES
        rows = max(_SUBLANES, rows)
        block_rows = R if rows >= R else rows
    else:
        # Single block spanning the full array: always satisfies the (8,128)
        # block-shape rule since block_shape == full array dims.
        block_rows = R

    grid = (pl.cdiv(R, block_rows),)

    y2 = pl.pallas_call(
        _identity_copy_kernel,
        out_shape=jax.ShapeDtypeStruct((R, C), x2.dtype),
        grid=grid,
        in_specs=[pl.BlockSpec((block_rows, C), lambda i: (i, 0))],
        out_specs=pl.BlockSpec((block_rows, C), lambda i: (i, 0)),
        compiler_params=pltpu.CompilerParams(
            dimension_semantics=("parallel",),
        ),
    )(x2)

    return y2.reshape(orig_shape)


def identity_forward(*x, materialize: bool = False):
    """Matches Identity.forward: tuple in -> tuple out; single in -> single out.

    materialize=False (default): return the inputs unchanged — exact PyTorch
        semantics and zero HBM traffic (top recommendation of the perf review).
    materialize=True: produce fresh output buffers via the Pallas copy kernel.
    """
    if materialize:
        outs = tuple(_pallas_copy(t) for t in x)
    else:
        outs = x
    if len(outs) > 1:
        return outs
    return outs[0]


if __name__ == "__main__":
    key = jax.random.PRNGKey(0)
    k1, k2 = jax.random.split(key)

    # Small shapes consistent with the module's usage (NCHW feature map + a 3D tensor).
    x = jax.random.normal(k1, (2, 4, 16, 16), dtype=jnp.float32)
    a = jax.random.normal(k2, (2, 8, 32), dtype=jnp.float32)

    # --- Default path: true pass-through (no copy at all). ---
    y = identity_forward(x)
    assert y is x
    outs = identity_forward(x, a)
    assert isinstance(outs, tuple) and len(outs) == 2
    assert outs[0] is x and outs[1] is a

    # --- Pallas-backed path: distinct output buffers, values identical. ---
    y_p = identity_forward(x, materialize=True)
    y_p = jax.block_until_ready(y_p)
    assert y_p.shape == x.shape and y_p.dtype == x.dtype
    assert bool(jnp.all(y_p == x))

    outs_p = identity_forward(x, a, materialize=True)
    outs_p = jax.block_until_ready(outs_p)
    assert isinstance(outs_p, tuple) and len(outs_p) == 2
    assert outs_p[0].shape == x.shape and outs_p[1].shape == a.shape
    assert bool(jnp.all(outs_p[0] == x)) and bool(jnp.all(outs_p[1] == a))

    print("KERNEL_OK")
</pallas_src>

<mosaic_0001>
module attributes {stable_mosaic.version = 11 : i64} {
  func.func @_identity_copy_kernel(%arg0: i32, %arg1: memref<1x2048xf32, #tpu.memory_space<vmem>>, %arg2: memref<1x2048xf32, #tpu.memory_space<vmem>>) attributes {dimension_semantics = [#tpu.dimension_semantics<parallel>], iteration_bounds = array<i64: 1>, scalar_prefetch = 0 : i64, scratch_operands = 0 : i64, tpu.core_type = #tpu.core_type<tc>, window_params = [{transform_indices = @transform_0, window_bounds = array<i64: 1, 2048>}, {transform_indices = @transform_1, window_bounds = array<i64: 1, 2048>}]} {
    %c0 = arith.constant 0 : index
    %c0_0 = arith.constant 0 : index
    %0 = vector.load %arg1[%c0, %c0_0] : memref<1x2048xf32, #tpu.memory_space<vmem>>, vector<1x2048xf32>
    %c0_1 = arith.constant 0 : index
    %c0_2 = arith.constant 0 : index
    %1 = vector.load %arg2[%c0_1, %c0_2] : memref<1x2048xf32, #tpu.memory_space<vmem>>, vector<1x2048xf32>
    tpu.vector_store %arg2[%c0_1, %c0_2], %0 {strides = array<i32>} : memref<1x2048xf32, #tpu.memory_space<vmem>>, vector<1x2048xf32>,
    return
  }
  func.func @transform_0(%arg0: i32) -> (i32, i32) {
    %c0_i32 = arith.constant 0 : i32
    %c0_i32_0 = arith.constant 0 : i32
    return %arg0, %c0_i32 : i32, i32
  }
  func.func @transform_1(%arg0: i32) -> (i32, i32) {
    %c0_i32 = arith.constant 0 : i32
    %c0_i32_0 = arith.constant 0 : i32
    return %arg0, %c0_i32 : i32, i32
  }
}

</mosaic_0001>

<llo_original>
// kernel: tpu_custom_call.1
$region0: #{tpu_custom_call.1}
  #allocation0 [shape = 'u32[]', space=smem, size = 0x4, offset = 0x4, fixed_abs, tag = 'smem constant byte address 0x4 - core index']
  #allocation1 [shape = 'u32[144,128]{1,0:T(1,128)}', space=vmem, size = 0x12000, scoped, tag = 'internal scratch']
  %s0 = inlined_call_operand.hbm [shape: f32[1,2048], index: 0, kind: input, shape index: {}]
  %s1 = inlined_call_operand.hbm [shape: f32[1,2048], index: 1, kind: output, shape index: {}]
  %s2 = sld [smem:[#allocation0]]
  $region18: #{tpu_custom_call.1} parent=0
    _
  %s4 = ssub.s32 1, %s2
  %s5 = scalar_select 0, %s4, %s2
  $region1: #{tpu_custom_call.1} parent=0
    #allocation2 [shape = 'u8[8192]{0}', space=vmem, size = 0x2000, scoped, tag = 'input window, operand 0, single buffered']
    #allocation3 [shape = 's32[1]{0}', space=sflag, size = 0x4, scoped, tag = 'scoped memory for tpu_custom_call.1']
    #allocation4 [shape = 's32[1]{0}', space=sflag, size = 0x4, scoped, tag = 'scoped memory for tpu_custom_call.1']
    #allocation5 [shape = 'u8[8192]{0}', space=vmem, size = 0x2000, scoped, tag = 'output window, operand 0, single buffered']
    %6 = vsyncpa [#allocation3], 0
    %7 = vsyncpa [#allocation4], 0
    // Predicated region
    $region2: #{tpu_custom_call.1} parent=1 // pred_check
      _
    $region3: #{tpu_custom_call.1} parent=1 // pred_check_branch
      %9 = sbr.rel (0) target = $region5
    $region4: #{tpu_custom_call.1} parent=1 // pred_region
      %s11 = ssub.s32 256, 256
      %12 = vsyncadd [#allocation3], %s11
      %s14 = sshll.u32 [#allocation2], 4
      %s15 = int_to_ptr.vmem [resolvable:$true] %s14
      %17 = dma.hbm_to_vmem [thread:$0]  %s0, 256, %s15, [#allocation3]
    $region5: #{tpu_custom_call.1} parent=1 // pred_fallthru
      _
    // Predicated region
    $region6: #{tpu_custom_call.1} parent=1 // pred_check
      _
    $region7: #{tpu_custom_call.1} parent=1 // pred_check_branch
      %19 = sbr.rel (0) target = $region9
    $region8: #{tpu_custom_call.1} parent=1 // pred_region
      %20 = dma.done [#allocation3], 256
    $region9: #{tpu_custom_call.1} parent=1 // pred_fallthru
      _
    %v21 = vld [vmem:[#allocation2] sm:$0xff]
    %v22 = vld [vmem:[#allocation2 + $0x8] sm:$0xff]
    %23 = vst [vmem:[#allocation5] sm:$0xff] %v21
    %24 = vst [vmem:[#allocation5 + $0x8] sm:$0xff] %v22
    // Predicated region
    $region10: #{tpu_custom_call.1} parent=1 // pred_check
      _
    $region11: #{tpu_custom_call.1} parent=1 // pred_check_branch
      %26 = sbr.rel (0) target = $region13
    $region12: #{tpu_custom_call.1} parent=1 // pred_region
      %s28 = ssub.s32 256, 256
      %29 = vsyncadd [#allocation4], %s28
      %s31 = sshll.u32 [#allocation5], 4
      %s32 = int_to_ptr.vmem [resolvable:$true] %s31
      %34 = dma.vmem_to_hbm [thread:$0]  %s32, 256, %s1, [#allocation4]
    $region13: #{tpu_custom_call.1} parent=1 // pred_fallthru
      _
    // Predicated region
    $region14: #{tpu_custom_call.1} parent=1 // pred_check
      _
    $region15: #{tpu_custom_call.1} parent=1 // pred_check_branch
      %36 = sbr.rel (0) target = $region17
    $region16: #{tpu_custom_call.1} parent=1 // pred_region
      %37 = dma.done [#allocation4], 256
    $region17: #{tpu_custom_call.1} parent=1 // pred_fallthru
      _
    %38 = vsyncpa [#allocation3], 1
    %39 = vsyncpa [#allocation4], 1

</llo_original>
